<compile_context>
chip_gen: v5e
topology: v5e:2x2
jax: 0.10.0
libtpu: 0.0.40
codegen_flags: <defaults>
</compile_context>

<pallas_src>
import math

import jax
import jax.numpy as jnp
from jax.experimental import pallas as pl
from jax.experimental.pallas import tpu as pltpu


def _round_up(x, m):
    return ((x + m - 1) // m) * m


def _mlp(x, w1, b1, w2, b2, w3, b3, w4, b4, w5, b5, compute_dtype=jnp.float32):
    """Fused MLP in plain JAX (fallback path + reference math)."""
    cd = compute_dtype
    f32 = jnp.float32
    h = jnp.maximum(jnp.dot(x.astype(cd), w1.astype(cd), preferred_element_type=f32) + b1, 0.0)
    h = jnp.dot(h.astype(cd), w2.astype(cd), preferred_element_type=f32) + b2
    h = jnp.maximum(jnp.dot(h.astype(cd), w3.astype(cd), preferred_element_type=f32) + b3, 0.0)
    h = jnp.maximum(jnp.dot(h.astype(cd), w4.astype(cd), preferred_element_type=f32) + b4, 0.0)
    a = jnp.dot(h.astype(cd), w5.astype(cd), preferred_element_type=f32) + b5
    return (math.pi / 4.0) * jnp.tanh(a)


def actor_kernel(x_ref,
                 w1_ref, b1_ref,
                 w2_ref, b2_ref,
                 w3_ref, b3_ref,
                 w4_ref, b4_ref,
                 w5_ref, b5_ref,
                 o_ref):
    # x_ref: (bb, state_dim + input_dim)   o_ref: (bb, action_dim)
    wd = w1_ref.dtype          # MXU compute dtype (bf16 or f32)
    f32 = jnp.float32

    x = x_ref[...]
    # l1 + relu   (MXU in wd, accumulate f32; bias/relu in f32)
    h = jnp.dot(x, w1_ref[...], preferred_element_type=f32) + b1_ref[...]
    h = jnp.maximum(h, 0.0)
    # l2 (no relu)
    h = jnp.dot(h.astype(wd), w2_ref[...], preferred_element_type=f32) + b2_ref[...]
    # l3 + relu
    h = jnp.maximum(
        jnp.dot(h.astype(wd), w3_ref[...], preferred_element_type=f32) + b3_ref[...], 0.0)
    # l4 + relu
    h = jnp.maximum(
        jnp.dot(h.astype(wd), w4_ref[...], preferred_element_type=f32) + b4_ref[...], 0.0)
    # l5 + pi/4 * tanh
    a = jnp.dot(h.astype(wd), w5_ref[...], preferred_element_type=f32) + b5_ref[...]
    o_ref[...] = ((math.pi / 4.0) * jnp.tanh(a)).astype(o_ref.dtype)


def actor_forward(s, s_a, w1, b1, w2, b2, w3, b3, w4, b4, w5, b5, *,
                  block_b=2048, compute_dtype=jnp.bfloat16, min_pallas_batch=512):
    """s: (B, ...) state, s_a: (B, ...) extra input; both flattened like torch .view."""
    B = s.shape[0]
    # torch: cat(view(s), view(s_a), dim=1) -- done once in the wrapper so the
    # kernel sees a single input stream (one DMA stream, one K-padded MXU pass).
    x = jnp.concatenate([s.reshape(B, -1).astype(jnp.float32),
                         s_a.reshape(B, -1).astype(jnp.float32)], axis=1)

    biases = tuple(b.astype(jnp.float32).reshape(1, -1) for b in (b1, b2, b3, b4, b5))

    # Small-batch fallback: XLA's fused MLP beats a one-step Pallas launch.
    if B < min_pallas_batch:
        return _mlp(x, w1, biases[0], w2, biases[1], w3, biases[2],
                    w4, biases[3], w5, biases[4], compute_dtype)

    feat = x.shape[1]
    action_dim = w5.shape[1]

    # Batch tile: as large as possible (per-step overhead dominates at these
    # feature sizes) but keep >=2 grid steps when B allows it (v7x megacore),
    # multiple of 8 sublanes, capped at block_b (VMEM-safe: lane padding to 128
    # makes a block cost ~bb*128*4 bytes, i.e. ~1 MiB at bb=2048).
    bb = min(block_b, _round_up(max(pl.cdiv(B, 2), 1), 8))
    if bb >= B:
        bb = B  # single full-extent block (block dim == array dim is legal)
    grid = (pl.cdiv(B, bb),)   # ragged last block: padded reads, masked writes

    x = x.astype(compute_dtype)
    weights = tuple(w.astype(compute_dtype) for w in (w1, w2, w3, w4, w5))
    params = (weights[0], biases[0], weights[1], biases[1], weights[2], biases[2],
              weights[3], biases[3], weights[4], biases[4])

    def const_spec(arr):
        # Same block every grid step -> DMA'd once, stays VMEM-resident.
        return pl.BlockSpec(arr.shape, lambda i: (0, 0))

    out = pl.pallas_call(
        actor_kernel,
        out_shape=jax.ShapeDtypeStruct((B, action_dim), jnp.float32),
        grid=grid,
        in_specs=[pl.BlockSpec((bb, feat), lambda i: (i, 0))]
                 + [const_spec(p) for p in params],
        out_specs=pl.BlockSpec((bb, action_dim), lambda i: (i, 0)),
        compiler_params=pltpu.CompilerParams(
            dimension_semantics=("parallel",),       # shard batch tiles across TCs (v7x)
            vmem_limit_bytes=32 * 1024 * 1024),      # safe on v7x's 64 MiB physical VMEM
    )(x, *params)

    return out


def actor_reference(s, s_a, w1, b1, w2, b2, w3, b3, w4, b4, w5, b5):
    """Pure-JAX f32 reference mirroring the PyTorch forward."""
    B = s.shape[0]
    x = jnp.concatenate([s.reshape(B, -1), s_a.reshape(B, -1)], axis=1)
    return _mlp(x, w1, b1.reshape(1, -1), w2, b2.reshape(1, -1), w3, b3.reshape(1, -1),
                w4, b4.reshape(1, -1), w5, b5.reshape(1, -1), jnp.float32)


if __name__ == "__main__":
    B = 2
    state_dim = 8
    input_shape = 16
    hidden_dim = 32
    action_dim = 4

    key = jax.random.PRNGKey(0)
    keys = jax.random.split(key, 14)

    s = jax.random.normal(keys[0], (B, state_dim), dtype=jnp.float32)
    s_a = jax.random.normal(keys[1], (B, input_shape), dtype=jnp.float32)

    def linear_params(kw, kb, fan_in, fan_out):
        # PyTorch-Linear-style uniform init bounds.
        bound = 1.0 / math.sqrt(fan_in)
        w = jax.random.uniform(kw, (fan_in, fan_out), jnp.float32, -bound, bound)
        b = jax.random.uniform(kb, (1, fan_out), jnp.float32, -bound, bound)
        return w, b

    w1, b1 = linear_params(keys[2], keys[3], state_dim + input_shape, 2 * hidden_dim)
    w2, b2 = linear_params(keys[4], keys[5], 2 * hidden_dim, hidden_dim)
    w3, b3 = linear_params(keys[6], keys[7], hidden_dim, hidden_dim)
    w4, b4 = linear_params(keys[8], keys[9], hidden_dim, hidden_dim)
    w5, b5 = linear_params(keys[10], keys[11], hidden_dim, action_dim)
    params = (w1, b1, w2, b2, w3, b3, w4, b4, w5, b5)

    ref = actor_reference(s, s_a, *params)

    # 1) Force the Pallas path (min_pallas_batch=0) in f32: tight correctness check.
    out = actor_forward(s, s_a, *params, compute_dtype=jnp.float32, min_pallas_batch=0)
    jax.block_until_ready(out)
    assert out.shape == (B, action_dim)
    assert jnp.allclose(out, ref, atol=1e-5, rtol=1e-5), "f32 kernel mismatch vs reference"

    # 2) Default bf16 MXU path through the kernel (f32 accumulation).
    out_bf16 = actor_forward(s, s_a, *params, compute_dtype=jnp.bfloat16, min_pallas_batch=0)
    jax.block_until_ready(out_bf16)
    assert out_bf16.shape == (B, action_dim)
    assert jnp.all(jnp.isfinite(out_bf16))
    assert jnp.allclose(out_bf16, ref, atol=1e-1), "bf16 kernel mismatch vs reference"

    # 3) Larger batch exercising the multi-step grid, megacore split and the
    #    ragged (masked) last block with no wrapper-side padding.
    B2 = 300
    s2 = jax.random.normal(keys[12], (B2, state_dim), dtype=jnp.float32)
    sa2 = jax.random.normal(keys[13], (B2, input_shape), dtype=jnp.float32)
    out2 = actor_forward(s2, sa2, *params, compute_dtype=jnp.float32, min_pallas_batch=0)
    jax.block_until_ready(out2)
    ref2 = actor_reference(s2, sa2, *params)
    assert out2.shape == (B2, action_dim)
    assert jnp.allclose(out2, ref2, atol=1e-5, rtol=1e-5), "ragged-grid kernel mismatch"

    print("KERNEL_OK")
</pallas_src>

<mosaic_0001>
module attributes {stable_mosaic.version = 11 : i64} {
  func.func @actor_kernel(%arg0: i32, %arg1: memref<2x24xf32, #tpu.memory_space<vmem>>, %arg2: memref<24x64xf32, #tpu.memory_space<vmem>>, %arg3: memref<1x64xf32, #tpu.memory_space<vmem>>, %arg4: memref<64x32xf32, #tpu.memory_space<vmem>>, %arg5: memref<1x32xf32, #tpu.memory_space<vmem>>, %arg6: memref<32x32xf32, #tpu.memory_space<vmem>>, %arg7: memref<1x32xf32, #tpu.memory_space<vmem>>, %arg8: memref<32x32xf32, #tpu.memory_space<vmem>>, %arg9: memref<1x32xf32, #tpu.memory_space<vmem>>, %arg10: memref<32x4xf32, #tpu.memory_space<vmem>>, %arg11: memref<1x4xf32, #tpu.memory_space<vmem>>, %arg12: memref<2x4xf32, #tpu.memory_space<vmem>>) attributes {dimension_semantics = [#tpu.dimension_semantics<parallel>], iteration_bounds = array<i64: 1>, scalar_prefetch = 0 : i64, scratch_operands = 0 : i64, tpu.core_type = #tpu.core_type<tc>, window_params = [{transform_indices = @transform_0, window_bounds = array<i64: 2, 24>}, {pipeline_mode = #tpu.pipeline_mode<synchronous>, transform_indices = @transform_1, window_bounds = array<i64: 24, 64>}, {pipeline_mode = #tpu.pipeline_mode<synchronous>, transform_indices = @transform_2, window_bounds = array<i64: 1, 64>}, {pipeline_mode = #tpu.pipeline_mode<synchronous>, transform_indices = @transform_3, window_bounds = array<i64: 64, 32>}, {pipeline_mode = #tpu.pipeline_mode<synchronous>, transform_indices = @transform_4, window_bounds = array<i64: 1, 32>}, {pipeline_mode = #tpu.pipeline_mode<synchronous>, transform_indices = @transform_5, window_bounds = array<i64: 32, 32>}, {pipeline_mode = #tpu.pipeline_mode<synchronous>, transform_indices = @transform_6, window_bounds = array<i64: 1, 32>}, {pipeline_mode = #tpu.pipeline_mode<synchronous>, transform_indices = @transform_7, window_bounds = array<i64: 32, 32>}, {pipeline_mode = #tpu.pipeline_mode<synchronous>, transform_indices = @transform_8, window_bounds = array<i64: 1, 32>}, {pipeline_mode = #tpu.pipeline_mode<synchronous>, transform_indices = @transform_9, window_bounds = array<i64: 32, 4>}, {pipeline_mode = #tpu.pipeline_mode<synchronous>, transform_indices = @transform_10, window_bounds = array<i64: 1, 4>}, {transform_indices = @transform_11, window_bounds = array<i64: 2, 4>}]} {
    %c0 = arith.constant 0 : index
    %c0_0 = arith.constant 0 : index
    %0 = vector.load %arg1[%c0, %c0_0] : memref<2x24xf32, #tpu.memory_space<vmem>>, vector<2x24xf32>
    %c0_1 = arith.constant 0 : index
    %c0_2 = arith.constant 0 : index
    %1 = vector.load %arg2[%c0_1, %c0_2] : memref<24x64xf32, #tpu.memory_space<vmem>>, vector<24x64xf32>
    %cst = arith.constant dense<0.000000e+00> : vector<2x64xf32>
    %2 = tpu.matmul %0, %1, %cst {dimension_numbers = #tpu.dot_dimension_numbers<[1], [0], [0], [1], [0, 0, 1, 1], [], []>} : vector<2x24xf32>, vector<24x64xf32>, vector<2x64xf32> -> vector<2x64xf32>
    %c0_3 = arith.constant 0 : index
    %c0_4 = arith.constant 0 : index
    %3 = vector.load %arg3[%c0_3, %c0_4] : memref<1x64xf32, #tpu.memory_space<vmem>>, vector<1x64xf32>
    %4 = vector.broadcast %3 : vector<1x64xf32> to vector<2x64xf32>
    %5 = arith.addf %2, %4 : vector<2x64xf32>
    %cst_5 = arith.constant 0.000000e+00 : f32
    %6 = vector.broadcast %cst_5 : f32 to vector<2x64xf32>
    %7 = arith.maximumf %5, %6 : vector<2x64xf32>
    %c0_6 = arith.constant 0 : index
    %c0_7 = arith.constant 0 : index
    %8 = vector.load %arg4[%c0_6, %c0_7] : memref<64x32xf32, #tpu.memory_space<vmem>>, vector<64x32xf32>
    %cst_8 = arith.constant dense<0.000000e+00> : vector<2x32xf32>
    %9 = tpu.matmul %7, %8, %cst_8 {dimension_numbers = #tpu.dot_dimension_numbers<[1], [0], [0], [1], [0, 0, 1, 1], [], []>} : vector<2x64xf32>, vector<64x32xf32>, vector<2x32xf32> -> vector<2x32xf32>
    %c0_9 = arith.constant 0 : index
    %c0_10 = arith.constant 0 : index
    %10 = vector.load %arg5[%c0_9, %c0_10] : memref<1x32xf32, #tpu.memory_space<vmem>>, vector<1x32xf32>
    %11 = vector.broadcast %10 : vector<1x32xf32> to vector<2x32xf32>
    %12 = arith.addf %9, %11 : vector<2x32xf32>
    %c0_11 = arith.constant 0 : index
    %c0_12 = arith.constant 0 : index
    %13 = vector.load %arg6[%c0_11, %c0_12] : memref<32x32xf32, #tpu.memory_space<vmem>>, vector<32x32xf32>
    %cst_13 = arith.constant dense<0.000000e+00> : vector<2x32xf32>
    %14 = tpu.matmul %12, %13, %cst_13 {dimension_numbers = #tpu.dot_dimension_numbers<[1], [0], [0], [1], [0, 0, 1, 1], [], []>} : vector<2x32xf32>, vector<32x32xf32>, vector<2x32xf32> -> vector<2x32xf32>
    %c0_14 = arith.constant 0 : index
    %c0_15 = arith.constant 0 : index
    %15 = vector.load %arg7[%c0_14, %c0_15] : memref<1x32xf32, #tpu.memory_space<vmem>>, vector<1x32xf32>
    %16 = vector.broadcast %15 : vector<1x32xf32> to vector<2x32xf32>
    %17 = arith.addf %14, %16 : vector<2x32xf32>
    %cst_16 = arith.constant 0.000000e+00 : f32
    %18 = vector.broadcast %cst_16 : f32 to vector<2x32xf32>
    %19 = arith.maximumf %17, %18 : vector<2x32xf32>
    %c0_17 = arith.constant 0 : index
    %c0_18 = arith.constant 0 : index
    %20 = vector.load %arg8[%c0_17, %c0_18] : memref<32x32xf32, #tpu.memory_space<vmem>>, vector<32x32xf32>
    %cst_19 = arith.constant dense<0.000000e+00> : vector<2x32xf32>
    %21 = tpu.matmul %19, %20, %cst_19 {dimension_numbers = #tpu.dot_dimension_numbers<[1], [0], [0], [1], [0, 0, 1, 1], [], []>} : vector<2x32xf32>, vector<32x32xf32>, vector<2x32xf32> -> vector<2x32xf32>
    %c0_20 = arith.constant 0 : index
    %c0_21 = arith.constant 0 : index
    %22 = vector.load %arg9[%c0_20, %c0_21] : memref<1x32xf32, #tpu.memory_space<vmem>>, vector<1x32xf32>
    %23 = vector.broadcast %22 : vector<1x32xf32> to vector<2x32xf32>
    %24 = arith.addf %21, %23 : vector<2x32xf32>
    %cst_22 = arith.constant 0.000000e+00 : f32
    %25 = vector.broadcast %cst_22 : f32 to vector<2x32xf32>
    %26 = arith.maximumf %24, %25 : vector<2x32xf32>
    %c0_23 = arith.constant 0 : index
    %c0_24 = arith.constant 0 : index
    %27 = vector.load %arg10[%c0_23, %c0_24] : memref<32x4xf32, #tpu.memory_space<vmem>>, vector<32x4xf32>
    %cst_25 = arith.constant dense<0.000000e+00> : vector<2x4xf32>
    %28 = tpu.matmul %26, %27, %cst_25 {dimension_numbers = #tpu.dot_dimension_numbers<[1], [0], [0], [1], [0, 0, 1, 1], [], []>} : vector<2x32xf32>, vector<32x4xf32>, vector<2x4xf32> -> vector<2x4xf32>
    %c0_26 = arith.constant 0 : index
    %c0_27 = arith.constant 0 : index
    %29 = vector.load %arg11[%c0_26, %c0_27] : memref<1x4xf32, #tpu.memory_space<vmem>>, vector<1x4xf32>
    %30 = vector.broadcast %29 : vector<1x4xf32> to vector<2x4xf32>
    %31 = arith.addf %28, %30 : vector<2x4xf32>
    %32 = math.tanh %31 : vector<2x4xf32>
    %cst_28 = arith.constant 0.785398185 : f32
    %33 = vector.broadcast %cst_28 : f32 to vector<2x4xf32>
    %34 = arith.mulf %33, %32 : vector<2x4xf32>
    %c0_29 = arith.constant 0 : index
    %c0_30 = arith.constant 0 : index
    %35 = vector.load %arg12[%c0_29, %c0_30] : memref<2x4xf32, #tpu.memory_space<vmem>>, vector<2x4xf32>
    tpu.vector_store %arg12[%c0_29, %c0_30], %34 {strides = array<i32>} : memref<2x4xf32, #tpu.memory_space<vmem>>, vector<2x4xf32>,
    return
  }
  func.func @transform_0(%arg0: i32) -> (i32, i32) {
    %c0_i32 = arith.constant 0 : i32
    %c0_i32_0 = arith.constant 0 : i32
    return %arg0, %c0_i32 : i32, i32
  }
  func.func @transform_1(%arg0: i32) -> (i32, i32) {
    %c0_i32 = arith.constant 0 : i32
    %c0_i32_0 = arith.constant 0 : i32
    %c0_i32_1 = arith.constant 0 : i32
    return %c0_i32, %c0_i32_0 : i32, i32
  }
  func.func @transform_2(%arg0: i32) -> (i32, i32) {
    %c0_i32 = arith.constant 0 : i32
    %c0_i32_0 = arith.constant 0 : i32
    %c0_i32_1 = arith.constant 0 : i32
    return %c0_i32, %c0_i32_0 : i32, i32
  }
  func.func @transform_3(%arg0: i32) -> (i32, i32) {
    %c0_i32 = arith.constant 0 : i32
    %c0_i32_0 = arith.constant 0 : i32
    %c0_i32_1 = arith.constant 0 : i32
    return %c0_i32, %c0_i32_0 : i32, i32
  }
  func.func @transform_4(%arg0: i32) -> (i32, i32) {
    %c0_i32 = arith.constant 0 : i32
    %c0_i32_0 = arith.constant 0 : i32
    %c0_i32_1 = arith.constant 0 : i32
    return %c0_i32, %c0_i32_0 : i32, i32
  }
  func.func @transform_5(%arg0: i32) -> (i32, i32) {
    %c0_i32 = arith.constant 0 : i32
    %c0_i32_0 = arith.constant 0 : i32
    %c0_i32_1 = arith.constant 0 : i32
    return %c0_i32, %c0_i32_0 : i32, i32
  }
  func.func @transform_6(%arg0: i32) -> (i32, i32) {
    %c0_i32 = arith.constant 0 : i32
    %c0_i32_0 = arith.constant 0 : i32
    %c0_i32_1 = arith.constant 0 : i32
    return %c0_i32, %c0_i32_0 : i32, i32
  }
  func.func @transform_7(%arg0: i32) -> (i32, i32) {
    %c0_i32 = arith.constant 0 : i32
    %c0_i32_0 = arith.constant 0 : i32
    %c0_i32_1 = arith.constant 0 : i32
    return %c0_i32, %c0_i32_0 : i32, i32
  }
  func.func @transform_8(%arg0: i32) -> (i32, i32) {
    %c0_i32 = arith.constant 0 : i32
    %c0_i32_0 = arith.constant 0 : i32
    %c0_i32_1 = arith.constant 0 : i32
    return %c0_i32, %c0_i32_0 : i32, i32
  }
  func.func @transform_9(%arg0: i32) -> (i32, i32) {
    %c0_i32 = arith.constant 0 : i32
    %c0_i32_0 = arith.constant 0 : i32
    %c0_i32_1 = arith.constant 0 : i32
    return %c0_i32, %c0_i32_0 : i32, i32
  }
  func.func @transform_10(%arg0: i32) -> (i32, i32) {
    %c0_i32 = arith.constant 0 : i32
    %c0_i32_0 = arith.constant 0 : i32
    %c0_i32_1 = arith.constant 0 : i32
    return %c0_i32, %c0_i32_0 : i32, i32
  }
  func.func @transform_11(%arg0: i32) -> (i32, i32) {
    %c0_i32 = arith.constant 0 : i32
    %c0_i32_0 = arith.constant 0 : i32
    return %arg0, %c0_i32 : i32, i32
  }
}

</mosaic_0001>

<llo_original>
// kernel: tpu_custom_call.1
$region0: #{tpu_custom_call.1}
  #allocation0 [shape = 'u32[]', space=smem, size = 0x4, offset = 0x4, fixed_abs, tag = 'smem constant byte address 0x4 - core index']
  #allocation1 [shape = 'u32[72,128]{1,0:T(1,128)}', space=vmem, size = 0x9000, scoped, tag = 'internal scratch']
  %s0 = inlined_call_operand.vmem [shape: f32[2,24], index: 0, kind: input, shape index: {}]
  %s1 = inlined_call_operand.vmem [shape: f32[24,64], index: 1, kind: input, shape index: {}]
  %s2 = inlined_call_operand.vmem [shape: f32[1,64], index: 2, kind: input, shape index: {}]
  %s3 = inlined_call_operand.vmem [shape: f32[64,32], index: 3, kind: input, shape index: {}]
  %s4 = inlined_call_operand.vmem [shape: f32[1,32], index: 4, kind: input, shape index: {}]
  %s5 = inlined_call_operand.vmem [shape: f32[32,32], index: 5, kind: input, shape index: {}]
  %s6 = inlined_call_operand.vmem [shape: f32[1,32], index: 6, kind: input, shape index: {}]
  %s7 = inlined_call_operand.vmem [shape: f32[32,32], index: 7, kind: input, shape index: {}]
  %s8 = inlined_call_operand.vmem [shape: f32[1,32], index: 8, kind: input, shape index: {}]
  %s9 = inlined_call_operand.vmem [shape: f32[32,4], index: 9, kind: input, shape index: {}]
  %s10 = inlined_call_operand.vmem [shape: f32[1,4], index: 10, kind: input, shape index: {}]
  %s11 = inlined_call_operand.hbm [shape: f32[2,4], index: 11, kind: output, shape index: {}]
  %s12 = sld [smem:[#allocation0]]
  $region54: #{tpu_custom_call.1} parent=0
    _
  %s14 = ssub.s32 1, %s12
  %s15 = scalar_select 0, %s14, %s12
  $region1: #{tpu_custom_call.1} parent=0
    #allocation2 [shape = 'u8[1024]{0}', space=vmem, size = 0x400, scoped, tag = 'output window, operand 0, single buffered']
    #allocation3 [shape = 's32[1]{0}', space=sflag, size = 0x4, scoped, tag = 'scoped memory for tpu_custom_call.1']
    %16 = vsyncpa [#allocation3], 0
    // Predicated region
    $region2: #{tpu_custom_call.1} parent=1 // pred_check
      _
    $region3: #{tpu_custom_call.1} parent=1 // pred_check_branch
      %18 = sbr.rel (0) target = $region5
    $region4: #{tpu_custom_call.1} parent=1 // pred_region
      _
    $region5: #{tpu_custom_call.1} parent=1 // pred_fallthru
      _
    // Predicated region
    $region6: #{tpu_custom_call.1} parent=1 // pred_check
      _
    $region7: #{tpu_custom_call.1} parent=1 // pred_check_branch
      %20 = sbr.rel (0) target = $region9
    $region8: #{tpu_custom_call.1} parent=1 // pred_region
      _
    $region9: #{tpu_custom_call.1} parent=1 // pred_fallthru
      _
    // Predicated region
    $region10: #{tpu_custom_call.1} parent=1 // pred_check
      _
    $region11: #{tpu_custom_call.1} parent=1 // pred_check_branch
      %22 = sbr.rel (0) target = $region13
    $region12: #{tpu_custom_call.1} parent=1 // pred_region
      _
    $region13: #{tpu_custom_call.1} parent=1 // pred_fallthru
      _
    // Predicated region
    $region14: #{tpu_custom_call.1} parent=1 // pred_check
      _
    $region15: #{tpu_custom_call.1} parent=1 // pred_check_branch
      %24 = sbr.rel (0) target = $region17
    $region16: #{tpu_custom_call.1} parent=1 // pred_region
      _
    $region17: #{tpu_custom_call.1} parent=1 // pred_fallthru
      _
    // Predicated region
    $region18: #{tpu_custom_call.1} parent=1 // pred_check
      _
    $region19: #{tpu_custom_call.1} parent=1 // pred_check_branch
      %26 = sbr.rel (0) target = $region21
    $region20: #{tpu_custom_call.1} parent=1 // pred_region
      _
    $region21: #{tpu_custom_call.1} parent=1 // pred_fallthru
      _
    // Predicated region
    $region22: #{tpu_custom_call.1} parent=1 // pred_check
      _
    $region23: #{tpu_custom_call.1} parent=1 // pred_check_branch
      %28 = sbr.rel (0) target = $region25
    $region24: #{tpu_custom_call.1} parent=1 // pred_region
      _
    $region25: #{tpu_custom_call.1} parent=1 // pred_fallthru
      _
    // Predicated region
    $region26: #{tpu_custom_call.1} parent=1 // pred_check
      _
    $region27: #{tpu_custom_call.1} parent=1 // pred_check_branch
      %30 = sbr.rel (0) target = $region29
    $region28: #{tpu_custom_call.1} parent=1 // pred_region
      _
    $region29: #{tpu_custom_call.1} parent=1 // pred_fallthru
      _
    // Predicated region
    $region30: #{tpu_custom_call.1} parent=1 // pred_check
      _
    $region31: #{tpu_custom_call.1} parent=1 // pred_check_branch
      %32 = sbr.rel (0) target = $region33
    $region32: #{tpu_custom_call.1} parent=1 // pred_region
      _
    $region33: #{tpu_custom_call.1} parent=1 // pred_fallthru
      _
    // Predicated region
    $region34: #{tpu_custom_call.1} parent=1 // pred_check
      _
    $region35: #{tpu_custom_call.1} parent=1 // pred_check_branch
      %34 = sbr.rel (0) target = $region37
    $region36: #{tpu_custom_call.1} parent=1 // pred_region
      _
    $region37: #{tpu_custom_call.1} parent=1 // pred_fallthru
      _
    // Predicated region
    $region38: #{tpu_custom_call.1} parent=1 // pred_check
      _
    $region39: #{tpu_custom_call.1} parent=1 // pred_check_branch
      %36 = sbr.rel (0) target = $region41
    $region40: #{tpu_custom_call.1} parent=1 // pred_region
      _
    $region41: #{tpu_custom_call.1} parent=1 // pred_fallthru
      _
    // Predicated region
    $region42: #{tpu_custom_call.1} parent=1 // pred_check
      _
    $region43: #{tpu_custom_call.1} parent=1 // pred_check_branch
      %38 = sbr.rel (0) target = $region45
    $region44: #{tpu_custom_call.1} parent=1 // pred_region
      _
    $region45: #{tpu_custom_call.1} parent=1 // pred_fallthru
      _
    %v39 = vld [vmem:[%s0] sm:$0x3]
    %v40 = vld [vmem:[%s1] sm:$0xff]
    %v41 = vld [vmem:[%s1 + $0x8] sm:$0xff]
    %v42 = vld [vmem:[%s1 + $0x10] sm:$0xff]
    %v43 = vld [vmem:[%s2] sm:$0x1]
    %v45 = vperm.slane %v43, 0
    %vm47 = vcmask 195584
    %v49 = vsel %vm47, %v39, 0
    %51 = vmatpush.msra.mxu0 0.0
    %52 = vmatpush.msra.mxu0 0.0
    %53 = vmatpush.msra.mxu0 0.0
    %54 = vmatpush.msra.mxu0 0.0
    %55 = vmatpush.msra.mxu0 0.0
    %56 = vmatpush.msra.mxu0 0.0
    %57 = vmatpush.msra.mxu0 0.0
    %58 = vmatpush.msra.mxu0 0.0
    %59 = vmatpush.msra.mxu0 0.0
    %60 = vmatpush.msra.mxu0 0.0
    %61 = vmatpush.msra.mxu0 0.0
    %62 = vmatpush.msra.mxu0 0.0
    %63 = vmatpush.msra.mxu0 0.0
    %64 = vmatpush.msra.mxu0 %v42
    %65 = vmatpush.msra.mxu0 %v41
    %66 = vmatpush.msra.mxu0 %v40
    %67 = vmatmul.f32.gmra.mxu0 %v49
    %v68 = vpop.f32.mrf.mxu0
    %v69 = vadd.f32 %v45, %v68
    %70 = vdwg.mxu0
    %v71 = vmax.f32 %v69, 0.0
    %v72 = vld [vmem:[%s3] sm:$0xff]
    %v73 = vld [vmem:[%s3 + $0x8] sm:$0xff]
    %v74 = vld [vmem:[%s3 + $0x10] sm:$0xff]
    %v75 = vld [vmem:[%s3 + $0x18] sm:$0xff]
    %v76 = vld [vmem:[%s3 + $0x20] sm:$0xff]
    %v77 = vld [vmem:[%s3 + $0x28] sm:$0xff]
    %v78 = vld [vmem:[%s3 + $0x30] sm:$0xff]
    %v79 = vld [vmem:[%s3 + $0x38] sm:$0xff]
    %v80 = vld [vmem:[%s4] sm:$0x1]
    %v82 = vperm.slane %v80, 0
    %vm84 = vcmask 523264
    %v86 = vsel %vm84, %v71, 0
    %88 = vmatpush.msra.mxu0 0.0
    %89 = vmatpush.msra.mxu0 0.0
    %90 = vmatpush.msra.mxu0 0.0
    %91 = vmatpush.msra.mxu0 0.0
    %92 = vmatpush.msra.mxu0 0.0
    %93 = vmatpush.msra.mxu0 0.0
    %94 = vmatpush.msra.mxu0 0.0
    %95 = vmatpush.msra.mxu0 0.0
    %96 = vmatpush.msra.mxu0 %v79
    %97 = vmatpush.msra.mxu0 %v78
    %98 = vmatpush.msra.mxu0 %v77
    %99 = vmatpush.msra.mxu0 %v76
    %100 = vmatpush.msra.mxu0 %v75
    %101 = vmatpush.msra.mxu0 %v74
    %102 = vmatpush.msra.mxu0 %v73
    %103 = vmatpush.msra.mxu0 %v72
    %104 = vmatmul.f32.gmra.mxu0 %v86
    %v105 = vpop.f32.mrf.mxu0
    %v106 = vadd.f32 %v82, %v105
    %107 = vdwg.mxu0
    %v108 = vld [vmem:[%s5] sm:$0xff]
    %v109 = vld [vmem:[%s5 + $0x8] sm:$0xff]
    %v110 = vld [vmem:[%s5 + $0x10] sm:$0xff]
    %v111 = vld [vmem:[%s5 + $0x18] sm:$0xff]
    %v112 = vld [vmem:[%s6] sm:$0x1]
    %v114 = vperm.slane %v112, 0
    %vm116 = vcmask 261120
    %v118 = vsel %vm116, %v106, 0
    %120 = vmatpush.msra.mxu0 0.0
    %121 = vmatpush.msra.mxu0 0.0
    %122 = vmatpush.msra.mxu0 0.0
    %123 = vmatpush.msra.mxu0 0.0
    %124 = vmatpush.msra.mxu0 0.0
    %125 = vmatpush.msra.mxu0 0.0
    %126 = vmatpush.msra.mxu0 0.0
    %127 = vmatpush.msra.mxu0 0.0
    %128 = vmatpush.msra.mxu0 0.0
    %129 = vmatpush.msra.mxu0 0.0
    %130 = vmatpush.msra.mxu0 0.0
    %131 = vmatpush.msra.mxu0 0.0
    %132 = vmatpush.msra.mxu0 %v111
    %133 = vmatpush.msra.mxu0 %v110
    %134 = vmatpush.msra.mxu0 %v109
    %135 = vmatpush.msra.mxu0 %v108
    %136 = vmatmul.f32.gmra.mxu0 %v118
    %v137 = vpop.f32.mrf.mxu0
    %v138 = vadd.f32 %v114, %v137
    %139 = vdwg.mxu0
    %v140 = vmax.f32 %v138, 0.0
    %v141 = vld [vmem:[%s7] sm:$0xff]
    %v142 = vld [vmem:[%s7 + $0x8] sm:$0xff]
    %v143 = vld [vmem:[%s7 + $0x10] sm:$0xff]
    %v144 = vld [vmem:[%s7 + $0x18] sm:$0xff]
    %v145 = vld [vmem:[%s8] sm:$0x1]
    %v147 = vperm.slane %v145, 0
    %v150 = vsel %vm116, %v140, 0
    %152 = vmatpush.msra.mxu0 0.0
    %153 = vmatpush.msra.mxu0 0.0
    %154 = vmatpush.msra.mxu0 0.0
    %155 = vmatpush.msra.mxu0 0.0
    %156 = vmatpush.msra.mxu0 0.0
    %157 = vmatpush.msra.mxu0 0.0
    %158 = vmatpush.msra.mxu0 0.0
    %159 = vmatpush.msra.mxu0 0.0
    %160 = vmatpush.msra.mxu0 0.0
    %161 = vmatpush.msra.mxu0 0.0
    %162 = vmatpush.msra.mxu0 0.0
    %163 = vmatpush.msra.mxu0 0.0
    %164 = vmatpush.msra.mxu0 %v144
    %165 = vmatpush.msra.mxu0 %v143
    %166 = vmatpush.msra.mxu0 %v142
    %167 = vmatpush.msra.mxu0 %v141
    %168 = vmatmul.f32.gmra.mxu0 %v150
    %v169 = vpop.f32.mrf.mxu0
    %v170 = vadd.f32 %v147, %v169
    %171 = vdwg.mxu0
    %v172 = vmax.f32 %v170, 0.0
    %v173 = vld [vmem:[%s9] sm:$0xff]
    %v174 = vld [vmem:[%s9 + $0x8] sm:$0xff]
    %v175 = vld [vmem:[%s9 + $0x10] sm:$0xff]
    %v176 = vld [vmem:[%s9 + $0x18] sm:$0xff]
    %v177 = vld [vmem:[%s10] sm:$0x1]
    %v179 = vperm.slane %v177, 0
    %v182 = vsel %vm116, %v172, 0
    %184 = vmatpush.msra.mxu0 0.0
    %185 = vmatpush.msra.mxu0 0.0
    %186 = vmatpush.msra.mxu0 0.0
    %187 = vmatpush.msra.mxu0 0.0
    %188 = vmatpush.msra.mxu0 0.0
    %189 = vmatpush.msra.mxu0 0.0
    %190 = vmatpush.msra.mxu0 0.0
    %191 = vmatpush.msra.mxu0 0.0
    %192 = vmatpush.msra.mxu0 0.0
    %193 = vmatpush.msra.mxu0 0.0
    %194 = vmatpush.msra.mxu0 0.0
    %195 = vmatpush.msra.mxu0 0.0
    %196 = vmatpush.msra.mxu0 %v176
    %197 = vmatpush.msra.mxu0 %v175
    %198 = vmatpush.msra.mxu0 %v174
    %199 = vmatpush.msra.mxu0 %v173
    %200 = vmatmul.f32.gmra.mxu0 %v182
    %v201 = vpop.f32.mrf.mxu0
    %v202 = vadd.f32 %v179, %v201
    %203 = vdwg.mxu0
    %v204 = vtanh.pop %v202
    %v205 = vmul.f32 %v204, 0.7853982
    %vm206 = vcmask 25600
    %207 = vst.msk [vmem:[#allocation2] sm:$0x3] %vm206, %v205
    // Predicated region
    $region46: #{tpu_custom_call.1} parent=1 // pred_check
      _
    $region47: #{tpu_custom_call.1} parent=1 // pred_check_branch
      %209 = sbr.rel (0) target = $region49
    $region48: #{tpu_custom_call.1} parent=1 // pred_region
      %211 = vsyncadd [#allocation3], 0
      %s213 = sshll.u32 [#allocation2], 4
      %s214 = int_to_ptr.vmem [resolvable:$true] %s213
      %s215 = sshll.u32 %s11, 4
      %s216 = int_to_ptr.hbm [resolvable:$true] %s215
      %218 = dma.vmem_to_hbm [thread:$0]  %s214, 32, %s216, [#allocation3]
    $region49: #{tpu_custom_call.1} parent=1 // pred_fallthru
      _
    // Predicated region
    $region50: #{tpu_custom_call.1} parent=1 // pred_check
      _
    $region51: #{tpu_custom_call.1} parent=1 // pred_check_branch
      %220 = sbr.rel (0) target = $region53
    $region52: #{tpu_custom_call.1} parent=1 // pred_region
      %222 = dma.done [#allocation3], 32
    $region53: #{tpu_custom_call.1} parent=1 // pred_fallthru
      _
    %223 = vsyncpa [#allocation3], 1

</llo_original>
